<compile_context>
chip_gen: v7x
topology: tpu7x:2x2x1
jax: 0.10.0
libtpu: 0.0.40
codegen_flags: <defaults>
</compile_context>

<pallas_src>
import functools

import jax
import jax.numpy as jnp
from jax import lax
from jax.experimental import pallas as pl
from jax.experimental.pallas import tpu as pltpu

WEIGHT = 0.01


def _entropy_loss_kernel(logits_ref, out_ref, acc_ref, *,
                         batch, tile_b, steps_per_chunk,
                         first_masked_tile, mask_needed):
    c = pl.program_id(0)          # chunk ("parallel" axis)
    s = pl.program_id(1)          # step within chunk ("arbitrary" axis)

    @pl.when(s == 0)
    def _init():
        acc_ref[...] = jnp.zeros_like(acc_ref)

    x = logits_ref[...].astype(jnp.float32)           # (tb, A)

    # Closed-form entropy of softmax(x) per row.
    m = jnp.max(x, axis=-1, keepdims=True)
    z = x - m
    e = jnp.exp(z)
    denom = jnp.sum(e, axis=-1, keepdims=True)        # (tb, 1)
    sum_ez = jnp.sum(e * z, axis=-1, keepdims=True)   # (tb, 1)
    ent = jnp.log(denom) - sum_ez * pl.reciprocal(denom, approx=False)  # (tb, 1)

    if mask_needed:
        tile = c * steps_per_chunk + s                # logical (unclamped) tile

        @pl.when(tile < first_masked_tile)
        def _acc_full():
            acc_ref[...] += ent

        @pl.when(tile >= first_masked_tile)
        def _acc_masked():
            row = tile * tile_b + lax.broadcasted_iota(jnp.int32, ent.shape, 0)
            acc_ref[...] += jnp.where(row < batch, ent, 0.0)
    else:
        acc_ref[...] += ent

    @pl.when(s == pl.num_programs(1) - 1)
    def _finalize():
        # Single cross-sublane reduce per chunk; broadcast the partial into the
        # chunk's (8,128) output block (wrapper reads [c, 0, 0]).
        out_ref[...] = jnp.zeros_like(out_ref) + jnp.sum(acc_ref[...])


def entropy_actor_loss(logits: jax.Array, weight: float = WEIGHT, *,
                       tile_rows: int | None = None,
                       num_chunks: int = 2,
                       target_tile_bytes: int = 2 * 1024 * 1024) -> jax.Array:
    """Scalar float32 loss = -weight * mean(entropy(Categorical(logits)))."""
    B, A = logits.shape
    itemsize = jnp.dtype(logits.dtype).itemsize
    sublane = {4: 8, 2: 16, 1: 32}.get(itemsize, 8)   # packed-sublane multiple

    # --- batch tile sized by bytes (~2 MiB), rounded to the sublane multiple.
    if tile_rows is None:
        tb = max(sublane, target_tile_bytes // (A * itemsize))
    else:
        tb = max(1, int(tile_rows))
    tb = min(tb, B)
    if tb < B and tb % sublane != 0:
        tb = max(sublane, (tb // sublane) * sublane)
    if tb >= B:
        tb = B

    total_tiles = -(-B // tb)
    nc = max(1, min(num_chunks, total_tiles))          # "parallel" partial sums
    steps = -(-total_tiles // nc)                      # serial steps per chunk
    mask_needed = (B % tb != 0) or (nc * steps != total_tiles)
    first_masked_tile = B // tb                        # tiles >= this need masking

    def in_map(c, s):
        # Clamp overshoot tiles of the last chunk; they are zeroed by the mask.
        return (jnp.minimum(c * steps + s, total_tiles - 1), 0)

    kernel = functools.partial(
        _entropy_loss_kernel, batch=B, tile_b=tb, steps_per_chunk=steps,
        first_masked_tile=first_masked_tile, mask_needed=mask_needed)

    out = pl.pallas_call(
        kernel,
        out_shape=jax.ShapeDtypeStruct((nc * 8, 128), jnp.float32),
        grid=(nc, steps),
        in_specs=[pl.BlockSpec((tb, A), in_map)],
        out_specs=pl.BlockSpec((8, 128), lambda c, s: (c, 0)),
        scratch_shapes=[pltpu.VMEM((tb, 1), jnp.float32)],
        compiler_params=pltpu.CompilerParams(
            # chunks shard across TensorCores (v7x megacore); inner axis is the
            # serial accumulation.  VMEM limit left at the scoped default — the
            # footprint (2 * tb * A * itemsize + small) is far below it.
            dimension_semantics=("parallel", "arbitrary"),
        ),
        cost_estimate=pl.CostEstimate(
            flops=6 * B * A,
            transcendentals=B * A + 2 * B,
            bytes_accessed=B * A * itemsize + nc * 8 * 128 * 4,
        ),
    )(logits)

    partials = out.reshape(nc, 8, 128)[:, 0, 0]        # one partial per chunk
    return (-weight / B) * jnp.sum(partials)


def _reference(logits: jax.Array, weight: float = WEIGHT) -> jax.Array:
    x = logits.astype(jnp.float32)
    logp = jax.nn.log_softmax(x, axis=-1)
    p = jnp.exp(logp)
    ent = -jnp.sum(p * logp, axis=-1)
    return -weight * jnp.mean(ent)


if __name__ == "__main__":
    # 1) Small demo shape (single tile, single chunk).
    key = jax.random.PRNGKey(0)
    B, A = 8, 32  # batch of 8 policy rows, 32 discrete actions
    logits = jax.random.normal(key, (B, A), dtype=jnp.float32)

    loss = entropy_actor_loss(logits)
    jax.block_until_ready(loss)
    ref = _reference(logits)
    assert jnp.allclose(loss, ref, atol=1e-5, rtol=1e-5), (loss, ref)

    # 2) Multi-tile / multi-chunk / partial-last-tile / overshoot path
    #    (9 tiles of 128 rows split over 2 "parallel" chunks of 5 steps).
    B2, A2 = 1037, 128
    logits2 = jax.random.normal(jax.random.PRNGKey(1), (B2, A2), dtype=jnp.float32)
    loss2 = entropy_actor_loss(logits2, tile_rows=128, num_chunks=2)
    jax.block_until_ready(loss2)
    ref2 = _reference(logits2)
    assert jnp.allclose(loss2, ref2, atol=1e-5, rtol=1e-5), (loss2, ref2)

    # 3) bf16 input: dtype-aware sublane rounding (tile 40 -> 32) + in-kernel cast.
    B3, A3 = 100, 64
    logits3 = jax.random.normal(jax.random.PRNGKey(2), (B3, A3)).astype(jnp.bfloat16)
    loss3 = entropy_actor_loss(logits3, tile_rows=40, num_chunks=2)
    jax.block_until_ready(loss3)
    ref3 = _reference(logits3)
    assert jnp.allclose(loss3, ref3, atol=2e-5, rtol=2e-5), (loss3, ref3)

    # 4) Auto byte-sized tiling path.
    B4, A4 = 4096, 32
    logits4 = jax.random.normal(jax.random.PRNGKey(3), (B4, A4), dtype=jnp.float32)
    loss4 = entropy_actor_loss(logits4)
    jax.block_until_ready(loss4)
    ref4 = _reference(logits4)
    assert jnp.allclose(loss4, ref4, atol=1e-5, rtol=1e-5), (loss4, ref4)

    print("KERNEL_OK")
</pallas_src>

<mosaic_0001>
module attributes {stable_mosaic.version = 11 : i64} {
  func.func @_entropy_loss_kernel(%arg0: i32, %arg1: i32, %arg2: memref<8x32xf32, #tpu.memory_space<vmem>>, %arg3: memref<8x128xf32, #tpu.memory_space<vmem>>, %arg4: memref<8x1xf32, #tpu.memory_space<vmem>>) attributes {dimension_semantics = [#tpu.dimension_semantics<parallel>, #tpu.dimension_semantics<arbitrary>], iteration_bounds = array<i64: 1, 1>, scalar_prefetch = 0 : i64, scratch_operands = 1 : i64, tpu.core_type = #tpu.core_type<tc>, window_params = [{transform_indices = @transform_0, window_bounds = array<i64: 8, 32>}, {transform_indices = @transform_1, window_bounds = array<i64: 8, 128>}]} {
    %c0_i32 = arith.constant 0 : i32
    %0 = arith.cmpi eq, %arg1, %c0_i32 : i32
    %1 = arith.extui %0 : i1 to i32
    %c0_i32_0 = arith.constant 0 : i32
    %2 = arith.cmpi ne, %1, %c0_i32_0 : i32
    scf.if %2 {
      %cst_10 = arith.constant 0.000000e+00 : f32
      %24 = vector.broadcast %cst_10 : f32 to vector<8x1xf32>
      %c0_11 = arith.constant 0 : index
      %c0_12 = arith.constant 0 : index
      %25 = vector.load %arg4[%c0_11, %c0_12] : memref<8x1xf32, #tpu.memory_space<vmem>>, vector<8x1xf32>
      tpu.vector_store %arg4[%c0_11, %c0_12], %24 {strides = array<i32>} : memref<8x1xf32, #tpu.memory_space<vmem>>, vector<8x1xf32>,
    } else {
    }
    %c0 = arith.constant 0 : index
    %c0_1 = arith.constant 0 : index
    %3 = vector.load %arg2[%c0, %c0_1] : memref<8x32xf32, #tpu.memory_space<vmem>>, vector<8x32xf32>
    %cst = arith.constant dense<0xFF800000> : vector<8xf32>
    %4 = vector.multi_reduction <maximumf>, %3, %cst [1] : vector<8x32xf32> to vector<8xf32>
    %5 = vector.shape_cast %4 : vector<8xf32> to vector<8x1xf32>
    %6 = vector.broadcast %5 : vector<8x1xf32> to vector<8x32xf32>
    %7 = arith.subf %3, %6 : vector<8x32xf32>
    %8 = math.exp %7 : vector<8x32xf32>
    %cst_2 = arith.constant dense<0.000000e+00> : vector<8xf32>
    %9 = vector.multi_reduction <add>, %8, %cst_2 [1] : vector<8x32xf32> to vector<8xf32>
    %10 = vector.shape_cast %9 : vector<8xf32> to vector<8x1xf32>
    %11 = arith.mulf %8, %7 : vector<8x32xf32>
    %cst_3 = arith.constant dense<0.000000e+00> : vector<8xf32>
    %12 = vector.multi_reduction <add>, %11, %cst_3 [1] : vector<8x32xf32> to vector<8xf32>
    %13 = vector.shape_cast %12 : vector<8xf32> to vector<8x1xf32>
    %14 = math.log %10 : vector<8x1xf32>
    %15 = tpu.reciprocal %10 : vector<8x1xf32> -> vector<8x1xf32>
    %16 = arith.mulf %13, %15 : vector<8x1xf32>
    %17 = arith.subf %14, %16 : vector<8x1xf32>
    %c0_4 = arith.constant 0 : index
    %c0_5 = arith.constant 0 : index
    %18 = vector.load %arg4[%c0_4, %c0_5] : memref<8x1xf32, #tpu.memory_space<vmem>>, vector<8x1xf32>
    %19 = arith.addf %18, %17 : vector<8x1xf32>
    %c0_6 = arith.constant 0 : index
    %c0_7 = arith.constant 0 : index
    %20 = vector.load %arg4[%c0_6, %c0_7] : memref<8x1xf32, #tpu.memory_space<vmem>>, vector<8x1xf32>
    tpu.vector_store %arg4[%c0_6, %c0_7], %19 {strides = array<i32>} : memref<8x1xf32, #tpu.memory_space<vmem>>, vector<8x1xf32>,
    %c0_i32_8 = arith.constant 0 : i32
    %21 = arith.cmpi eq, %arg1, %c0_i32_8 : i32
    %22 = arith.extui %21 : i1 to i32
    %c0_i32_9 = arith.constant 0 : i32
    %23 = arith.cmpi ne, %22, %c0_i32_9 : i32
    scf.if %23 {
      %cst_10 = arith.constant 0.000000e+00 : f32
      %24 = vector.broadcast %cst_10 : f32 to vector<8x128xf32>
      %c0_11 = arith.constant 0 : index
      %c0_12 = arith.constant 0 : index
      %25 = vector.load %arg4[%c0_11, %c0_12] : memref<8x1xf32, #tpu.memory_space<vmem>>, vector<8x1xf32>
      %26 = vector.shape_cast %25 : vector<8x1xf32> to vector<1x8x1xf32>
      %cst_13 = arith.constant dense<0.000000e+00> : vector<1xf32>
      %27 = vector.multi_reduction <add>, %26, %cst_13 [1, 2] : vector<1x8x1xf32> to vector<1xf32>
      %28 = vector.shape_cast %27 : vector<1xf32> to vector<1x1x1xf32>
      %29 = vector.extract %28[0, 0, 0] : f32 from vector<1x1x1xf32>
      %30 = vector.broadcast %29 : f32 to vector<8x128xf32>
      %31 = arith.addf %24, %30 : vector<8x128xf32>
      %c0_14 = arith.constant 0 : index
      %c0_15 = arith.constant 0 : index
      %32 = vector.load %arg3[%c0_14, %c0_15] : memref<8x128xf32, #tpu.memory_space<vmem>>, vector<8x128xf32>
      tpu.vector_store %arg3[%c0_14, %c0_15], %31 {strides = array<i32>} : memref<8x128xf32, #tpu.memory_space<vmem>>, vector<8x128xf32>,
    } else {
    }
    return
  }
  func.func @transform_0(%arg0: i32, %arg1: i32) -> (i32, i32) {
    %c1_i32 = arith.constant 1 : i32
    %0 = arith.muli %arg0, %c1_i32 : i32
    %1 = arith.addi %0, %arg1 : i32
    %c0_i32 = arith.constant 0 : i32
    %2 = arith.minsi %1, %c0_i32 : i32
    %c0_i32_0 = arith.constant 0 : i32
    %c0_i32_1 = arith.constant 0 : i32
    return %2, %c0_i32_0 : i32, i32
  }
  func.func @transform_1(%arg0: i32, %arg1: i32) -> (i32, i32) {
    %c0_i32 = arith.constant 0 : i32
    %c0_i32_0 = arith.constant 0 : i32
    return %arg0, %c0_i32 : i32, i32
  }
}

</mosaic_0001>

<llo_original>
// kernel: tpu_custom_call.1
$region0: #{tpu_custom_call.1}
  #allocation0 [shape = 'u32[]', space=smem, size = 0x4, offset = 0x4, fixed_abs, tag = 'smem constant byte address 0x4 - core index']
  #allocation1 [shape = 'u32[144,128]{1,0:T(1,128)}', space=vmem, size = 0x12000, scoped, tag = 'internal scratch']
  #allocation2 [shape = 'f32[8,1]{1,0:T(8,128)}', space=vmem, size = 0x1000, scoped, tag = 'scratch operand']
  %s0 = inlined_call_operand.hbm [shape: f32[8,32], index: 0, kind: input, shape index: {}]
  %s1 = inlined_call_operand.hbm [shape: f32[8,128], index: 1, kind: output, shape index: {}]
  %s2 = sld [smem:[#allocation0]]
  $region26: #{tpu_custom_call.1} parent=0
    _
  %s4 = ssub.s32 1, %s2
  %s5 = scalar_select 0, %s4, %s2
  $region1: #{tpu_custom_call.1} parent=0
    #allocation3 [shape = 'u8[4096]{0}', space=vmem, size = 0x1000, scoped, tag = 'input window, operand 0, single buffered']
    #allocation4 [shape = 's32[1]{0}', space=sflag, size = 0x4, scoped, tag = 'scoped memory for tpu_custom_call.1']
    #allocation5 [shape = 's32[1]{0}', space=sflag, size = 0x4, scoped, tag = 'scoped memory for tpu_custom_call.1']
    #allocation6 [shape = 'u8[4096]{0}', space=vmem, size = 0x1000, scoped, tag = 'output window, operand 0, single buffered']
    %6 = vsyncpa [#allocation4], 0
    %7 = vsyncpa [#allocation5], 0
    // Predicated region
    $region2: #{tpu_custom_call.1} parent=1 // pred_check
      _
    $region3: #{tpu_custom_call.1} parent=1 // pred_check_branch
      %9 = sbr.rel (0) target = $region5
    $region4: #{tpu_custom_call.1} parent=1 // pred_region
      %s10 = sadd.s32 0, 0
      %p11 = scmp.lt.s32.totalorder %s10, 0
      %s12 = scalar_select %p11, %s10, 0
      %s14 = ssub.s32 128, 128
      %15 = vsyncadd [#allocation4], %s14
      %s16 = smul.addr %s12, 128
      %s17 = scalar_lea.hbm %s0, %s16
      %s19 = sshll.u32 [#allocation3], 4
      %s20 = int_to_ptr.vmem [resolvable:$true] %s19
      %22 = dma.hbm_to_vmem [thread:$0]  %s17, 128, %s20, [#allocation4]
    $region5: #{tpu_custom_call.1} parent=1 // pred_fallthru
      _
    // Predicated region
    $region6: #{tpu_custom_call.1} parent=1 // pred_check
      _
    $region7: #{tpu_custom_call.1} parent=1 // pred_check_branch
      %24 = sbr.rel (0) target = $region9
    $region8: #{tpu_custom_call.1} parent=1 // pred_region
      %25 = dma.done [#allocation4], 128
    $region9: #{tpu_custom_call.1} parent=1 // pred_fallthru
      _
    %s26 = sadd.s32 0, 0
    %p27 = scmp.lt.s32.totalorder %s26, 0
    %s28 = scalar_select %p27, %s26, 0
    %p29 = scmp.eq.s32.totalorder 0, 0
    // Predicated region
    $region10: #{tpu_custom_call.1} parent=1 // pred_check
      %p30 = pneg %p29
    $region11: #{tpu_custom_call.1} parent=1 // pred_check_branch
      %32 = sbr.rel (%p30) target = $region13
    $region12: #{tpu_custom_call.1} parent=1 // pred_region
      %vm33 = vcmask 7168
      %34 = vst.msk [vmem:[#allocation2] sm:$0xff] %vm33, 0.0
    $region13: #{tpu_custom_call.1} parent=1 // pred_fallthru
      _
    %v35 = vld [vmem:[#allocation3] sm:$0xff]
    %vm36 = vcmask 261120
    %v37 = vsel %vm36, %v35, -inf
    %38 = vmax.xlane.f32.xlu0 %v37
    %v39 = vpop.xlane.xlu0 %38
    %v40 = vsub.f32 %v35, %v39
    %v41 = vmul.f32 %v40, 1.442695
    %v42 = vpow.pop %v41
    %v43 = vsel %vm36, %v42, 0.0
    %44 = vadd.xlane.f32.xlu0 %v43
    %v45 = vpop.xlane.xlu0 %44
    %v46 = vmul.f32 %v42, %v40
    %v47 = vsel %vm36, %v46, 0.0
    %48 = vadd.xlane.f32.xlu0 %v47
    %v49 = vpop.xlane.xlu0 %48
    %v50 = vlog2.pop %v45
    %v51 = vmul.f32 %v50, 0.6931472
    %v52 = vrcp.pop %v45
    %v53 = vmul.f32 %v49, %v52
    %v54 = vsub.f32 %v51, %v53
    %v55 = vld [vmem:[#allocation2] sm:$0xff]
    %v56 = vadd.f32 %v55, %v54
    %vm57 = vcmask 7168
    %58 = vst.msk [vmem:[#allocation2] sm:$0xff] %vm57, %v56
    // Predicated region
    $region14: #{tpu_custom_call.1} parent=1 // pred_check
      %p59 = pneg %p29
    $region15: #{tpu_custom_call.1} parent=1 // pred_check_branch
      %61 = sbr.rel (%p59) target = $region17
    $region16: #{tpu_custom_call.1} parent=1 // pred_region
      %v62 = vld [vmem:[#allocation2] sm:$0xff]
      %v63 = vsel %vm57, %v62, 0.0
      %64 = vadd.xlane.f32.xlu0 %v63
      %v65 = vpop.xlane.xlu0 %64
      %v66 = vrot.slane %v65, 4
      %v67 = vadd.f32 %v65, %v66
      %v68 = vrot.slane %v67, 2
      %v69 = vadd.f32 %v67, %v68
      %v70 = vrot.slane %v69, 1
      %v71 = vadd.f32 %v69, %v70
      %s72 = vtos %v71
      %v73 = vstv %s72
      %v74 = vadd.f32 %v73, 0.0
      %75 = vst [vmem:[#allocation6] sm:$0xff] %v74
    $region17: #{tpu_custom_call.1} parent=1 // pred_fallthru
      _
    // Predicated region
    $region18: #{tpu_custom_call.1} parent=1 // pred_check
      _
    $region19: #{tpu_custom_call.1} parent=1 // pred_check_branch
      %77 = sbr.rel (0) target = $region21
    $region20: #{tpu_custom_call.1} parent=1 // pred_region
      %s79 = ssub.s32 128, 128
      %80 = vsyncadd [#allocation5], %s79
      %s82 = sshll.u32 [#allocation6], 4
      %s83 = int_to_ptr.vmem [resolvable:$true] %s82
      %85 = dma.vmem_to_hbm [thread:$0]  %s83, 128, %s1, [#allocation5]
    $region21: #{tpu_custom_call.1} parent=1 // pred_fallthru
      _
    // Predicated region
    $region22: #{tpu_custom_call.1} parent=1 // pred_check
      _
    $region23: #{tpu_custom_call.1} parent=1 // pred_check_branch
      %87 = sbr.rel (0) target = $region25
    $region24: #{tpu_custom_call.1} parent=1 // pred_region
      %88 = dma.done [#allocation5], 128
    $region25: #{tpu_custom_call.1} parent=1 // pred_fallthru
      _
    %89 = vsyncpa [#allocation4], 1
    %90 = vsyncpa [#allocation5], 1

</llo_original>
